<compile_context>
chip_gen: v5e
topology: v5e:2x2
jax: 0.10.0
libtpu: 0.0.40
codegen_flags: <defaults>
</compile_context>

<pallas_src>
import jax
import jax.numpy as jnp
from jax.experimental import pallas as pl
from jax.experimental.pallas import tpu as pltpu

INPUT_SIZE = 64
NUM_CLASSES = 100
HIDDEN_PAD = 128   # hidden dim 4 padded to a full lane width
OUT_PAD = 128      # class dim 100 padded to a full lane width


def _round_up(n, m):
    return (n + m - 1) // m * m


def mynet_kernel(x_ref, w1_ref, b1_ref, w4_ref, b4_ref, o_ref):
    # X arrives straight from HBM in f32; cast to bf16 in-kernel (VPU work is
    # hidden under the DMA for this mem-bound kernel).
    x = x_ref[...].astype(jnp.bfloat16)                                # (TB, 64)
    # fc1 + relu1 : bf16 MXU matmul, f32 accumulation + f32 epilogue.
    h = jnp.dot(x, w1_ref[...], preferred_element_type=jnp.float32)   # (TB, 128) f32
    h = jnp.maximum(h + b1_ref[...], 0.0)
    # fc4 + relu4 : feed bf16 back into the MXU, accumulate f32.
    y = jnp.dot(h.astype(w4_ref.dtype), w4_ref[...],
                preferred_element_type=jnp.float32)                   # (TB, 128) f32
    y = jnp.maximum(y + b4_ref[...], 0.0)
    o_ref[...] = y.astype(o_ref.dtype)


def prepare_params(params):
    """One-time prep (outside the hot path): transpose to (in, out), zero-pad
    hidden 4->128 and classes 100->128, cast weights to bf16, keep biases f32.
    Padded b4 columns MUST stay zero so padded output lanes are exactly 0."""
    w1 = jnp.zeros((INPUT_SIZE, HIDDEN_PAD), jnp.float32)
    w1 = w1.at[:, :4].set(params["fc1_w"].T)                   # (64, 128)
    b1 = jnp.zeros((1, HIDDEN_PAD), jnp.float32)
    b1 = b1.at[:, :4].set(params["fc1_b"][None, :])            # (1, 128)
    w4 = jnp.zeros((HIDDEN_PAD, OUT_PAD), jnp.float32)
    w4 = w4.at[:4, :NUM_CLASSES].set(params["fc4_w"].T)        # (128, 128)
    b4 = jnp.zeros((1, OUT_PAD), jnp.float32)
    b4 = b4.at[:, :NUM_CLASSES].set(params["fc4_b"][None, :])  # (1, 128)
    return {
        "w1": w1.astype(jnp.bfloat16),
        "b1": b1,
        "w4": w4.astype(jnp.bfloat16),
        "b4": b4,
    }


def mynet_forward(x, prepped, *, tb=4096, out_dtype=jnp.float32):
    """x: (B, INPUT_SIZE) float32. prepped: output of prepare_params()."""
    B = x.shape[0]

    # Tile sizing: big tiles amortize the ~0.35 us per-grid-step pipeline
    # overhead; never exceed the batch, and for B > 8 keep the grid at >= 2
    # steps so the "parallel" axis can split across v7x's two TensorCores.
    tb_cap = _round_up(B, 8)
    if B > 8:
        tb_cap = min(tb_cap, _round_up((B + 1) // 2, 8))
    tb = max(8, min(tb, tb_cap))
    grid = pl.cdiv(B, tb)          # ragged last block handled by Pallas masking

    def resident(arr):
        return pl.BlockSpec(arr.shape, lambda i: (0, 0))   # stays in VMEM

    out_bytes = OUT_PAD * jnp.dtype(out_dtype).itemsize
    cost = pl.CostEstimate(
        flops=2 * B * (INPUT_SIZE * HIDDEN_PAD + HIDDEN_PAD * OUT_PAD),
        transcendentals=0,
        bytes_accessed=B * (INPUT_SIZE * 4 + out_bytes)
        + 2 * (prepped["w1"].size + prepped["w4"].size)      # bf16 weights
        + 4 * (prepped["b1"].size + prepped["b4"].size),     # f32 biases
    )

    out = pl.pallas_call(
        mynet_kernel,
        out_shape=jax.ShapeDtypeStruct((B, OUT_PAD), out_dtype),
        grid=(grid,),
        in_specs=[
            pl.BlockSpec((tb, INPUT_SIZE), lambda i: (i, 0)),   # X tiled over batch
            resident(prepped["w1"]),
            resident(prepped["b1"]),
            resident(prepped["w4"]),
            resident(prepped["b4"]),
        ],
        out_specs=pl.BlockSpec((tb, OUT_PAD), lambda i: (i, 0)),
        compiler_params=pltpu.CompilerParams(
            dimension_semantics=("parallel",),   # batch axis shards across TCs on v7x
            vmem_limit_bytes=48 << 20,           # safe on v7x's 64 MiB per-TC VMEM
        ),
        cost_estimate=cost,
    )(x, prepped["w1"], prepped["b1"], prepped["w4"], prepped["b4"])

    # Keep exact (B, num_classes) semantics; bandwidth-critical callers can
    # consume the lane-dense (B, 128) slab directly instead.
    return out[:, :NUM_CLASSES]


def init_params(key):
    """Deterministic init mimicking nn.Linear's uniform(-1/sqrt(fan_in), +)."""
    ks = jax.random.split(key, 8)

    def linear(kw, kb, fan_in, fan_out):
        bound = 1.0 / jnp.sqrt(fan_in)
        w = jax.random.uniform(kw, (fan_out, fan_in), jnp.float32, -bound, bound)
        b = jax.random.uniform(kb, (fan_out,), jnp.float32, -bound, bound)
        return w, b

    p = {}
    p["fc1_w"], p["fc1_b"] = linear(ks[0], ks[1], INPUT_SIZE, 4)
    # fc2 (5->4) and fc3 (2->2) exist in __init__ but are unused in forward().
    p["fc2_w"], p["fc2_b"] = linear(ks[2], ks[3], 5, 4)
    p["fc3_w"], p["fc3_b"] = linear(ks[4], ks[5], 2, 2)
    p["fc4_w"], p["fc4_b"] = linear(ks[6], ks[7], 4, NUM_CLASSES)
    return p


def reference_forward_f32(x, params):
    """PyTorch-equivalent f32 reference."""
    h = jnp.maximum(x @ params["fc1_w"].T + params["fc1_b"], 0.0)
    y = jnp.maximum(h @ params["fc4_w"].T + params["fc4_b"], 0.0)
    return y


def reference_forward_bf16(x, prepped):
    """Reference mirroring the kernel's bf16-in / f32-accumulate numerics."""
    xb = x.astype(jnp.bfloat16)
    h = jnp.dot(xb, prepped["w1"], preferred_element_type=jnp.float32) + prepped["b1"]
    h = jnp.maximum(h, 0.0)
    y = jnp.dot(h.astype(jnp.bfloat16), prepped["w4"],
                preferred_element_type=jnp.float32) + prepped["b4"]
    y = jnp.maximum(y, 0.0)
    return y[:, :NUM_CLASSES]


if __name__ == "__main__":
    key = jax.random.PRNGKey(0)
    kx, kx2, kp = jax.random.split(key, 3)

    params = init_params(kp)
    prepped = prepare_params(params)

    # Small-batch case (single tile).
    batch = 8
    x = jax.random.normal(kx, (batch, INPUT_SIZE), dtype=jnp.float32)
    out = jax.block_until_ready(mynet_forward(x, prepped))
    assert out.shape == (batch, NUM_CLASSES)

    # Tight check against a reference with identical bf16/f32 numerics.
    ref_bf16 = reference_forward_bf16(x, prepped)
    assert jnp.allclose(out, ref_bf16, atol=1e-3, rtol=1e-3), "mismatch vs bf16-path reference"

    # Sanity check against the full-f32 PyTorch-style reference (bf16 rounding slack).
    ref_f32 = reference_forward_f32(x, params)
    assert jnp.allclose(out, ref_f32, atol=3e-2, rtol=3e-2), "mismatch vs f32 reference"

    # Exercise the multi-step parallel grid + ragged last block path (no padding).
    batch2 = 50
    x2 = jax.random.normal(kx2, (batch2, INPUT_SIZE), dtype=jnp.float32)
    out2 = jax.block_until_ready(mynet_forward(x2, prepped))
    assert out2.shape == (batch2, NUM_CLASSES)
    assert jnp.allclose(out2, reference_forward_bf16(x2, prepped), atol=1e-3, rtol=1e-3), \
        "mismatch vs bf16-path reference (ragged grid)"

    print("KERNEL_OK")
</pallas_src>

<mosaic_0001>
module attributes {stable_mosaic.version = 11 : i64} {
  func.func @mynet_kernel(%arg0: i32, %arg1: memref<8x64xf32, #tpu.memory_space<vmem>>, %arg2: memref<64x128xbf16, #tpu.memory_space<vmem>>, %arg3: memref<1x128xf32, #tpu.memory_space<vmem>>, %arg4: memref<128x128xbf16, #tpu.memory_space<vmem>>, %arg5: memref<1x128xf32, #tpu.memory_space<vmem>>, %arg6: memref<8x128xf32, #tpu.memory_space<vmem>>) attributes {dimension_semantics = [#tpu.dimension_semantics<parallel>], iteration_bounds = array<i64: 1>, scalar_prefetch = 0 : i64, scratch_operands = 0 : i64, tpu.core_type = #tpu.core_type<tc>, window_params = [{transform_indices = @transform_0, window_bounds = array<i64: 8, 64>}, {pipeline_mode = #tpu.pipeline_mode<synchronous>, transform_indices = @transform_1, window_bounds = array<i64: 64, 128>}, {pipeline_mode = #tpu.pipeline_mode<synchronous>, transform_indices = @transform_2, window_bounds = array<i64: 1, 128>}, {pipeline_mode = #tpu.pipeline_mode<synchronous>, transform_indices = @transform_3, window_bounds = array<i64: 128, 128>}, {pipeline_mode = #tpu.pipeline_mode<synchronous>, transform_indices = @transform_4, window_bounds = array<i64: 1, 128>}, {transform_indices = @transform_5, window_bounds = array<i64: 8, 128>}]} {
    %c0 = arith.constant 0 : index
    %c0_0 = arith.constant 0 : index
    %0 = vector.load %arg1[%c0, %c0_0] : memref<8x64xf32, #tpu.memory_space<vmem>>, vector<8x64xf32>
    %1 = arith.truncf %0 : vector<8x64xf32> to vector<8x64xbf16>
    %c0_1 = arith.constant 0 : index
    %c0_2 = arith.constant 0 : index
    %2 = vector.load %arg2[%c0_1, %c0_2] : memref<64x128xbf16, #tpu.memory_space<vmem>>, vector<64x128xbf16>
    %cst = arith.constant dense<0.000000e+00> : vector<8x128xf32>
    %3 = tpu.matmul %1, %2, %cst {dimension_numbers = #tpu.dot_dimension_numbers<[1], [0], [0], [1], [0, 0, 1, 1], [], []>} : vector<8x64xbf16>, vector<64x128xbf16>, vector<8x128xf32> -> vector<8x128xf32>
    %c0_3 = arith.constant 0 : index
    %c0_4 = arith.constant 0 : index
    %4 = vector.load %arg3[%c0_3, %c0_4] : memref<1x128xf32, #tpu.memory_space<vmem>>, vector<1x128xf32>
    %5 = vector.broadcast %4 : vector<1x128xf32> to vector<8x128xf32>
    %6 = arith.addf %3, %5 : vector<8x128xf32>
    %cst_5 = arith.constant 0.000000e+00 : f32
    %7 = vector.broadcast %cst_5 : f32 to vector<8x128xf32>
    %8 = arith.maximumf %6, %7 : vector<8x128xf32>
    %9 = arith.truncf %8 : vector<8x128xf32> to vector<8x128xbf16>
    %c0_6 = arith.constant 0 : index
    %c0_7 = arith.constant 0 : index
    %10 = vector.load %arg4[%c0_6, %c0_7] : memref<128x128xbf16, #tpu.memory_space<vmem>>, vector<128x128xbf16>
    %cst_8 = arith.constant dense<0.000000e+00> : vector<8x128xf32>
    %11 = tpu.matmul %9, %10, %cst_8 {dimension_numbers = #tpu.dot_dimension_numbers<[1], [0], [0], [1], [0, 0, 1, 1], [], []>} : vector<8x128xbf16>, vector<128x128xbf16>, vector<8x128xf32> -> vector<8x128xf32>
    %c0_9 = arith.constant 0 : index
    %c0_10 = arith.constant 0 : index
    %12 = vector.load %arg5[%c0_9, %c0_10] : memref<1x128xf32, #tpu.memory_space<vmem>>, vector<1x128xf32>
    %13 = vector.broadcast %12 : vector<1x128xf32> to vector<8x128xf32>
    %14 = arith.addf %11, %13 : vector<8x128xf32>
    %cst_11 = arith.constant 0.000000e+00 : f32
    %15 = vector.broadcast %cst_11 : f32 to vector<8x128xf32>
    %16 = arith.maximumf %14, %15 : vector<8x128xf32>
    %c0_12 = arith.constant 0 : index
    %c0_13 = arith.constant 0 : index
    %17 = vector.load %arg6[%c0_12, %c0_13] : memref<8x128xf32, #tpu.memory_space<vmem>>, vector<8x128xf32>
    tpu.vector_store %arg6[%c0_12, %c0_13], %16 {strides = array<i32>} : memref<8x128xf32, #tpu.memory_space<vmem>>, vector<8x128xf32>,
    return
  }
  func.func @transform_0(%arg0: i32) -> (i32, i32) {
    %c0_i32 = arith.constant 0 : i32
    %c0_i32_0 = arith.constant 0 : i32
    return %arg0, %c0_i32 : i32, i32
  }
  func.func @transform_1(%arg0: i32) -> (i32, i32) {
    %c0_i32 = arith.constant 0 : i32
    %c0_i32_0 = arith.constant 0 : i32
    %c0_i32_1 = arith.constant 0 : i32
    return %c0_i32, %c0_i32_0 : i32, i32
  }
  func.func @transform_2(%arg0: i32) -> (i32, i32) {
    %c0_i32 = arith.constant 0 : i32
    %c0_i32_0 = arith.constant 0 : i32
    %c0_i32_1 = arith.constant 0 : i32
    return %c0_i32, %c0_i32_0 : i32, i32
  }
  func.func @transform_3(%arg0: i32) -> (i32, i32) {
    %c0_i32 = arith.constant 0 : i32
    %c0_i32_0 = arith.constant 0 : i32
    %c0_i32_1 = arith.constant 0 : i32
    return %c0_i32, %c0_i32_0 : i32, i32
  }
  func.func @transform_4(%arg0: i32) -> (i32, i32) {
    %c0_i32 = arith.constant 0 : i32
    %c0_i32_0 = arith.constant 0 : i32
    %c0_i32_1 = arith.constant 0 : i32
    return %c0_i32, %c0_i32_0 : i32, i32
  }
  func.func @transform_5(%arg0: i32) -> (i32, i32) {
    %c0_i32 = arith.constant 0 : i32
    %c0_i32_0 = arith.constant 0 : i32
    return %arg0, %c0_i32 : i32, i32
  }
}

</mosaic_0001>

<llo_original>
// kernel: tpu_custom_call.1
$region0: #{tpu_custom_call.1}
  #allocation0 [shape = 'u32[]', space=smem, size = 0x4, offset = 0x4, fixed_abs, tag = 'smem constant byte address 0x4 - core index']
  #allocation1 [shape = 'u32[72,128]{1,0:T(1,128)}', space=vmem, size = 0x9000, scoped, tag = 'internal scratch']
  %s0 = inlined_call_operand.hbm [shape: f32[8,64], index: 0, kind: input, shape index: {}]
  %s1 = inlined_call_operand.hbm [shape: bf16[64,128], index: 1, kind: input, shape index: {}]
  %s2 = inlined_call_operand.vmem [shape: f32[1,128], index: 2, kind: input, shape index: {}]
  %s3 = inlined_call_operand.hbm [shape: bf16[128,128], index: 3, kind: input, shape index: {}]
  %s4 = inlined_call_operand.vmem [shape: f32[1,128], index: 4, kind: input, shape index: {}]
  %s5 = inlined_call_operand.hbm [shape: f32[8,128], index: 5, kind: output, shape index: {}]
  %s6 = sld [smem:[#allocation0]]
  $region42: #{tpu_custom_call.1} parent=0
    _
  %s8 = ssub.s32 1, %s6
  %s9 = scalar_select 0, %s8, %s6
  $region1: #{tpu_custom_call.1} parent=0
    #allocation2 [shape = 'u8[4096]{0}', space=vmem, size = 0x1000, scoped, tag = 'input window, operand 0, single buffered']
    #allocation3 [shape = 's32[1]{0}', space=sflag, size = 0x4, scoped, tag = 'scoped memory for tpu_custom_call.1']
    #allocation4 [shape = 's32[1]{0}', space=sflag, size = 0x4, scoped, tag = 'scoped memory for tpu_custom_call.1']
    #allocation5 [shape = 'u8[16384]{0}', space=vmem, size = 0x4000, scoped, tag = 'input window, operand 1, single buffered']
    #allocation6 [shape = 's32[1]{0}', space=sflag, size = 0x4, scoped, tag = 'scoped memory for tpu_custom_call.1']
    #allocation7 [shape = 'u8[32768]{0}', space=vmem, size = 0x8000, scoped, tag = 'input window, operand 3, single buffered']
    #allocation8 [shape = 'u8[4096]{0}', space=vmem, size = 0x1000, scoped, tag = 'output window, operand 0, single buffered']
    %10 = vsyncpa [#allocation3], 0
    %11 = vsyncpa [#allocation6], 0
    %12 = vsyncpa [#allocation4], 0
    // Predicated region
    $region2: #{tpu_custom_call.1} parent=1 // pred_check
      _
    $region3: #{tpu_custom_call.1} parent=1 // pred_check_branch
      %14 = sbr.rel (0) target = $region5
    $region4: #{tpu_custom_call.1} parent=1 // pred_region
      %16 = vsyncadd [#allocation3], 0
      %s18 = sshll.u32 %s0, 4
      %s19 = int_to_ptr.hbm [resolvable:$true] %s18
      %s20 = sshll.u32 [#allocation2], 4
      %s21 = int_to_ptr.vmem [resolvable:$true] %s20
      %23 = dma.hbm_to_vmem [thread:$0]  %s19, 128, %s21, [#allocation3]
    $region5: #{tpu_custom_call.1} parent=1 // pred_fallthru
      _
    // Predicated region
    $region6: #{tpu_custom_call.1} parent=1 // pred_check
      _
    $region7: #{tpu_custom_call.1} parent=1 // pred_check_branch
      %25 = sbr.rel (0) target = $region9
    $region8: #{tpu_custom_call.1} parent=1 // pred_region
      %27 = vsyncadd [#allocation6], 0
      %s28 = sshll.u32 %s1, 4
      %s29 = int_to_ptr.hbm [resolvable:$true] %s28
      %s30 = sshll.u32 [#allocation5], 4
      %s31 = int_to_ptr.vmem [resolvable:$true] %s30
      %36 = dma.hbm_to_vmem [thread:$0]  %s29, 512, %s31, [#allocation6], 64, 64, 4
    $region9: #{tpu_custom_call.1} parent=1 // pred_fallthru
      _
    // Predicated region
    $region10: #{tpu_custom_call.1} parent=1 // pred_check
      _
    $region11: #{tpu_custom_call.1} parent=1 // pred_check_branch
      %38 = sbr.rel (0) target = $region13
    $region12: #{tpu_custom_call.1} parent=1 // pred_region
      _
    $region13: #{tpu_custom_call.1} parent=1 // pred_fallthru
      _
    // Predicated region
    $region14: #{tpu_custom_call.1} parent=1 // pred_check
      _
    $region15: #{tpu_custom_call.1} parent=1 // pred_check_branch
      %40 = sbr.rel (0) target = $region17
    $region16: #{tpu_custom_call.1} parent=1 // pred_region
      %42 = vsyncadd [#allocation6], 0
      %s43 = sshll.u32 %s3, 4
      %s44 = int_to_ptr.hbm [resolvable:$true] %s43
      %s45 = sshll.u32 [#allocation7], 4
      %s46 = int_to_ptr.vmem [resolvable:$true] %s45
      %51 = dma.hbm_to_vmem [thread:$0]  %s44, 1024, %s46, [#allocation6], 64, 64, 4
    $region17: #{tpu_custom_call.1} parent=1 // pred_fallthru
      _
    // Predicated region
    $region18: #{tpu_custom_call.1} parent=1 // pred_check
      _
    $region19: #{tpu_custom_call.1} parent=1 // pred_check_branch
      %53 = sbr.rel (0) target = $region21
    $region20: #{tpu_custom_call.1} parent=1 // pred_region
      _
    $region21: #{tpu_custom_call.1} parent=1 // pred_fallthru
      _
    // Predicated region
    $region22: #{tpu_custom_call.1} parent=1 // pred_check
      _
    $region23: #{tpu_custom_call.1} parent=1 // pred_check_branch
      %55 = sbr.rel (0) target = $region25
    $region24: #{tpu_custom_call.1} parent=1 // pred_region
      %57 = dma.done [#allocation3], 128
    $region25: #{tpu_custom_call.1} parent=1 // pred_fallthru
      _
    // Predicated region
    $region26: #{tpu_custom_call.1} parent=1 // pred_check
      _
    $region27: #{tpu_custom_call.1} parent=1 // pred_check_branch
      %59 = sbr.rel (0) target = $region29
    $region28: #{tpu_custom_call.1} parent=1 // pred_region
      %61 = dma.done [#allocation6], 512
    $region29: #{tpu_custom_call.1} parent=1 // pred_fallthru
      _
    // Predicated region
    $region30: #{tpu_custom_call.1} parent=1 // pred_check
      _
    $region31: #{tpu_custom_call.1} parent=1 // pred_check_branch
      %63 = sbr.rel (0) target = $region33
    $region32: #{tpu_custom_call.1} parent=1 // pred_region
      %65 = dma.done [#allocation6], 1024
    $region33: #{tpu_custom_call.1} parent=1 // pred_fallthru
      _
    %v67 = vld [vmem:[#allocation2] sm:$0xff]
    %v68 = vpack.c.bf16 %v67, %v67
    %v69 = vld [vmem:[#allocation5] sm:$0xf]
    %v70 = vld [vmem:[#allocation5 + $0x4] sm:$0xf]
    %v71 = vld [vmem:[#allocation5 + $0x8] sm:$0xf]
    %v72 = vld [vmem:[#allocation5 + $0xc] sm:$0xf]
    %v73 = vld [vmem:[#allocation5 + $0x10] sm:$0xf]
    %v74 = vld [vmem:[#allocation5 + $0x14] sm:$0xf]
    %v75 = vld [vmem:[#allocation5 + $0x18] sm:$0xf]
    %v76 = vld [vmem:[#allocation5 + $0x1c] sm:$0xf]
    %v77 = vld [vmem:[%s2] sm:$0x1]
    %v79 = vperm.slane %v77, 0
    %v89 = vunpack.c.l.b16 %v69
    %v90 = vunpack.c.l.b16 %v70
    %v91 = vunpack.c.l.b16 %v71
    %v92 = vunpack.c.l.b16 %v72
    %v93 = vunpack.c.l.b16 %v73
    %v94 = vunpack.c.l.b16 %v74
    %v95 = vunpack.c.l.b16 %v75
    %v96 = vunpack.c.l.b16 %v76
    %v97 = vpack.c.b16 %v90, %v89
    %v98 = vpack.c.b16 %v92, %v91
    %v99 = vpack.c.b16 %v94, %v93
    %v100 = vpack.c.b16 %v96, %v95
    %vm105 = vcmask 523264
    %v107 = vsel %vm105, %v68, 0
    %109 = vmatpush.bf16.msra.mxu0 0
    %110 = vmatpush.bf16.msra.mxu0 0
    %111 = vmatpush.bf16.msra.mxu0 0
    %112 = vmatpush.bf16.msra.mxu0 0
    %113 = vmatpush.bf16.msra.mxu0 %v100
    %114 = vmatpush.bf16.msra.mxu0 %v99
    %115 = vmatpush.bf16.msra.mxu0 %v98
    %116 = vmatpush.bf16.msra.mxu0 %v97
    %117 = vmatmul.bf16.gmra.mxu0 %v107
    %v118 = vpop.f32.mrf.mxu0
    %v119 = vadd.f32 %v79, %v118
    %v120 = vpop.f32.mrf.mxu0
    %121 = vdwg.mxu0
    %v122 = vmax.f32 %v119, 0.0
    %v123 = vpack.c.bf16 %v122, %v122
    %v124 = vld [vmem:[#allocation7] sm:$0xf]
    %v125 = vld [vmem:[#allocation7 + $0x4] sm:$0xf]
    %v126 = vld [vmem:[#allocation7 + $0x8] sm:$0xf]
    %v127 = vld [vmem:[#allocation7 + $0xc] sm:$0xf]
    %v128 = vld [vmem:[#allocation7 + $0x10] sm:$0xf]
    %v129 = vld [vmem:[#allocation7 + $0x14] sm:$0xf]
    %v130 = vld [vmem:[#allocation7 + $0x18] sm:$0xf]
    %v131 = vld [vmem:[#allocation7 + $0x1c] sm:$0xf]
    %v132 = vld [vmem:[#allocation7 + $0x20] sm:$0xf]
    %v133 = vld [vmem:[#allocation7 + $0x24] sm:$0xf]
    %v134 = vld [vmem:[#allocation7 + $0x28] sm:$0xf]
    %v135 = vld [vmem:[#allocation7 + $0x2c] sm:$0xf]
    %v136 = vld [vmem:[#allocation7 + $0x30] sm:$0xf]
    %v137 = vld [vmem:[#allocation7 + $0x34] sm:$0xf]
    %v138 = vld [vmem:[#allocation7 + $0x38] sm:$0xf]
    %v139 = vld [vmem:[#allocation7 + $0x3c] sm:$0xf]
    %v140 = vld [vmem:[%s4] sm:$0x1]
    %v142 = vperm.slane %v140, 0
    %v160 = vunpack.c.l.b16 %v124
    %v161 = vunpack.c.l.b16 %v125
    %v162 = vunpack.c.l.b16 %v126
    %v163 = vunpack.c.l.b16 %v127
    %v164 = vunpack.c.l.b16 %v128
    %v165 = vunpack.c.l.b16 %v129
    %v166 = vunpack.c.l.b16 %v130
    %v167 = vunpack.c.l.b16 %v131
    %v168 = vunpack.c.l.b16 %v132
    %v169 = vunpack.c.l.b16 %v133
    %v170 = vunpack.c.l.b16 %v134
    %v171 = vunpack.c.l.b16 %v135
    %v172 = vunpack.c.l.b16 %v136
    %v173 = vunpack.c.l.b16 %v137
    %v174 = vunpack.c.l.b16 %v138
    %v175 = vunpack.c.l.b16 %v139
    %v176 = vpack.c.b16 %v161, %v160
    %v177 = vpack.c.b16 %v163, %v162
    %v178 = vpack.c.b16 %v165, %v164
    %v179 = vpack.c.b16 %v167, %v166
    %v180 = vpack.c.b16 %v169, %v168
    %v181 = vpack.c.b16 %v171, %v170
    %v182 = vpack.c.b16 %v173, %v172
    %v183 = vpack.c.b16 %v175, %v174
    %192 = vmatpush.bf16.msra.mxu0 %v183
    %193 = vmatpush.bf16.msra.mxu0 %v182
    %194 = vmatpush.bf16.msra.mxu0 %v181
    %195 = vmatpush.bf16.msra.mxu0 %v180
    %196 = vmatpush.bf16.msra.mxu0 %v179
    %197 = vmatpush.bf16.msra.mxu0 %v178
    %198 = vmatpush.bf16.msra.mxu0 %v177
    %199 = vmatpush.bf16.msra.mxu0 %v176
    %200 = vmatmul.bf16.gmra.mxu0 %v123
    %v201 = vpop.f32.mrf.mxu0
    %v202 = vadd.f32 %v142, %v201
    %v203 = vpop.f32.mrf.mxu0
    %204 = vdwg.mxu0
    %v205 = vmax.f32 %v202, 0.0
    %206 = vst [vmem:[#allocation8] sm:$0xff] %v205
    // Predicated region
    $region34: #{tpu_custom_call.1} parent=1 // pred_check
      _
    $region35: #{tpu_custom_call.1} parent=1 // pred_check_branch
      %208 = sbr.rel (0) target = $region37
    $region36: #{tpu_custom_call.1} parent=1 // pred_region
      %210 = vsyncadd [#allocation4], 0
      %s212 = sshll.u32 [#allocation8], 4
      %s213 = int_to_ptr.vmem [resolvable:$true] %s212
      %s214 = sshll.u32 %s5, 4
      %s215 = int_to_ptr.hbm [resolvable:$true] %s214
      %217 = dma.vmem_to_hbm [thread:$0]  %s213, 128, %s215, [#allocation4]
    $region37: #{tpu_custom_call.1} parent=1 // pred_fallthru
      _
    // Predicated region
    $region38: #{tpu_custom_call.1} parent=1 // pred_check
      _
    $region39: #{tpu_custom_call.1} parent=1 // pred_check_branch
      %219 = sbr.rel (0) target = $region41
    $region40: #{tpu_custom_call.1} parent=1 // pred_region
      %221 = dma.done [#allocation4], 128
    $region41: #{tpu_custom_call.1} parent=1 // pred_fallthru
      _
    %222 = vsyncpa [#allocation3], 1
    %223 = vsyncpa [#allocation6], 1
    %224 = vsyncpa [#allocation4], 1

</llo_original>
